<compile_context>
chip_gen: v7x
topology: tpu7x:2x2x1
jax: 0.10.0
libtpu: 0.0.40
codegen_flags: <defaults>
</compile_context>

<pallas_src>
import functools
import math

import jax
import jax.numpy as jnp
from jax.experimental import pallas as pl
from jax.experimental.pallas import tpu as pltpu

_MIB = 1 << 20


def _leaky_relu(z, negative_slope):
    return jnp.where(z > 0, z, negative_slope * z)


def _to_bf16(v):
    return v if v.dtype == jnp.bfloat16 else v.astype(jnp.bfloat16)


# ---------------------------------------------------------------------------
# Generic tiled-matmul kernels: bf16 MXU inputs (f32 tiles are cast in-kernel),
# f32 accumulation, optional fused leaky_relu epilogue.
# ---------------------------------------------------------------------------
def _mm_kernel_single_k(a_ref, b_ref, o_ref, *, negative_slope):
    z = jnp.dot(_to_bf16(a_ref[...]), _to_bf16(b_ref[...]),
                preferred_element_type=jnp.float32)
    if negative_slope is not None:
        z = _leaky_relu(z, negative_slope)
    o_ref[...] = z.astype(o_ref.dtype)


def _mm_kernel_multi_k(a_ref, b_ref, o_ref, acc_ref, *, negative_slope):
    k = pl.program_id(2)

    @pl.when(k == 0)
    def _():
        acc_ref[...] = jnp.zeros_like(acc_ref)

    acc_ref[...] += jnp.dot(_to_bf16(a_ref[...]), _to_bf16(b_ref[...]),
                            preferred_element_type=jnp.float32)

    @pl.when(k == pl.num_programs(2) - 1)
    def _():
        z = acc_ref[...]
        if negative_slope is not None:
            z = _leaky_relu(z, negative_slope)
        o_ref[...] = z.astype(o_ref.dtype)


# ---------------------------------------------------------------------------
# Wrapper helpers.
# ---------------------------------------------------------------------------
def _round_up(v, m):
    return ((v + m - 1) // m) * m


def _pad2d(a, rows, cols):
    pr = rows - a.shape[0]
    pc = cols - a.shape[1]
    if pr or pc:
        a = jnp.pad(a, ((0, pr), (0, pc)))
    return a


def _largest_divisor_tile(dim_pad, cap):
    """Largest multiple of 128 that divides dim_pad (a 128-multiple), <= cap."""
    t = cap
    while t > 128 and dim_pad % t:
        t -= 128
    return t


def _pick_col_tile(dim_pad, cap):
    """Lane tile: any multiple of 128 <= cap; pad dim up to a tile multiple.
    Minimizes (#tiles, padding waste) so e.g. 640 -> tile 384 / 2 tiles,
    not tile 128 / 5 tiles (which would multiply adj re-reads)."""
    if dim_pad <= cap:
        return dim_pad, dim_pad
    best = None
    for blk in range(cap, 0, -128):
        tiles = -(-dim_pad // blk)
        waste = tiles * blk - dim_pad
        key = (tiles, waste, -blk)
        if best is None or key < best[0]:
            best = (key, blk)
    blk = best[1]
    return blk, -(-dim_pad // blk) * blk


def _vmem_budget_and_caps():
    """(vmem_limit budget, tm/tk cap, tn cap), per chip generation.
    Conservative fallback (48 MiB / 256 / 512) is safe on v7x's 64 MiB VMEM."""
    vmem_bytes = 64 * _MIB
    try:
        vmem_bytes = int(pltpu.get_tpu_info().vmem_capacity_bytes)
    except Exception:
        pass
    if vmem_bytes >= 100 * _MIB:           # v5e / v6e: 128 MiB per TensorCore
        return 96 * _MIB, 512, 1024
    return 48 * _MIB, 256, 512             # v7x: 64 MiB -> leave compiler headroom


def _tiled_matmul(a, b, *, negative_slope=None, out_dtype=jnp.float32):
    """out = (optionally leaky_relu)(a @ b), tiled MXU matmul, f32 accumulation."""
    M, K = a.shape
    Kb, N = b.shape
    assert K == Kb, (a.shape, b.shape)

    budget, cap_mk, cap_n = _vmem_budget_and_caps()

    m_pad = _round_up(M, 128)
    k_pad = _round_up(K, 128)
    tn, n_pad = _pick_col_tile(_round_up(N, 128), cap_n)
    tm = _largest_divisor_tile(m_pad, cap_mk)
    tk = _largest_divisor_tile(k_pad, cap_mk)

    m_tiles = m_pad // tm
    j_tiles = n_pad // tn
    k_tiles = k_pad // tk

    # Megacore load balance (v7x has 2 TensorCores): keep >= 2 parallel slices.
    if m_tiles * j_tiles == 1 and m_pad >= 16:
        tm = m_pad // 2          # m_pad is a 128-multiple -> tm stays 8-aligned
        m_tiles = 2

    # Cast/pad policy: pay a wrapper-side bf16 copy only when it amortizes
    # (operand re-read by several tiles) or a pad copy is unavoidable; in that
    # case cast BEFORE padding.  Otherwise feed the original dtype straight to
    # the kernel (zero wrapper copies on the dominant N^2 adjacency stream) and
    # cast the tile in-kernel.
    def _prep(arr, rows, cols, reread):
        needs_pad = arr.shape != (rows, cols)
        if needs_pad or reread > 1:
            if arr.dtype != jnp.bfloat16:
                arr = arr.astype(jnp.bfloat16)
            arr = _pad2d(arr, rows, cols)
        return arr

    a_p = _prep(a, m_pad, k_pad, j_tiles)   # a re-read j_tiles times
    b_p = _prep(b, k_pad, n_pad, m_tiles)   # b re-read m_tiles times

    a_bytes = jnp.dtype(a_p.dtype).itemsize
    b_bytes = jnp.dtype(b_p.dtype).itemsize
    o_bytes = jnp.dtype(out_dtype).itemsize

    # VMEM working set: double-buffered input/output tiles + f32 accumulator.
    est = (2 * tm * tk * a_bytes + 2 * tk * tn * b_bytes
           + 2 * tm * tn * o_bytes + (tm * tn * 4 if k_tiles > 1 else 0))
    vmem_limit = int(min(budget, max(est + 8 * _MIB, 32 * _MIB)))

    if k_tiles == 1:
        kernel = functools.partial(_mm_kernel_single_k,
                                   negative_slope=negative_slope)
        grid = (m_tiles, j_tiles)
        in_specs = [
            pl.BlockSpec((tm, tk), lambda i, j: (i, 0)),
            pl.BlockSpec((tk, tn), lambda i, j: (0, j)),
        ]
        out_spec = pl.BlockSpec((tm, tn), lambda i, j: (i, j))
        scratch = []
        dims = ("parallel", "parallel")
    else:
        kernel = functools.partial(_mm_kernel_multi_k,
                                   negative_slope=negative_slope)
        grid = (m_tiles, j_tiles, k_tiles)
        in_specs = [
            pl.BlockSpec((tm, tk), lambda i, j, k: (i, k)),
            pl.BlockSpec((tk, tn), lambda i, j, k: (k, j)),
        ]
        out_spec = pl.BlockSpec((tm, tn), lambda i, j, k: (i, j))
        scratch = [pltpu.VMEM((tm, tn), jnp.float32)]
        dims = ("parallel", "parallel", "arbitrary")

    out_p = pl.pallas_call(
        kernel,
        out_shape=jax.ShapeDtypeStruct((m_pad, n_pad), out_dtype),
        grid_spec=pltpu.PrefetchScalarGridSpec(
            num_scalar_prefetch=0,
            grid=grid,
            in_specs=in_specs,
            out_specs=out_spec,
            scratch_shapes=scratch,
        ),
        compiler_params=pltpu.CompilerParams(
            dimension_semantics=dims,
            vmem_limit_bytes=vmem_limit),
    )(a_p, b_p)

    if (m_pad, n_pad) != (M, N):
        out_p = out_p[:M, :N]
    return out_p


def graph_conv_sparse_forward(x, adj, weight, *, negative_slope=0.01):
    """out = leaky_relu(adj @ (x @ weight)) == leaky_relu((adj @ x) @ weight)."""
    N, d_in = x.shape
    d_out = weight.shape[1]
    assert adj.shape == (N, N)
    assert weight.shape[0] == d_in

    if d_out <= d_in:
        # h = x @ W (thin intermediate, bf16), then leaky(adj @ h).
        h = _tiled_matmul(x, weight, out_dtype=jnp.bfloat16)
        out = _tiled_matmul(adj, h, negative_slope=negative_slope,
                            out_dtype=jnp.float32)
    else:
        # s = adj @ x (thin intermediate, bf16), then leaky(s @ W).
        s = _tiled_matmul(adj, x, out_dtype=jnp.bfloat16)
        out = _tiled_matmul(s, weight, negative_slope=negative_slope,
                            out_dtype=jnp.float32)
    return out


def kaiming_uniform(key, shape):
    """Deterministic replica of nn.init.kaiming_uniform_ defaults
    (a=0, mode='fan_in', leaky_relu): fan_in = shape[1] for 2-D tensors."""
    fan_in = shape[1]
    gain = math.sqrt(2.0)
    bound = gain * math.sqrt(3.0 / fan_in)
    return jax.random.uniform(key, shape, jnp.float32, minval=-bound, maxval=bound)


if __name__ == "__main__":
    # Small shapes consistent with the module's forward.
    N_NODES = 128     # number of graph nodes (rows of x, size of adj)
    D_IN = 64         # input_dim
    D_OUT = 128       # output_dim

    key = jax.random.PRNGKey(0)
    k_x, k_adj, k_w = jax.random.split(key, 3)

    x = jax.random.normal(k_x, (N_NODES, D_IN), dtype=jnp.float32)
    # Dense stand-in for the (normalized) adjacency matrix.
    adj = jax.random.uniform(k_adj, (N_NODES, N_NODES), dtype=jnp.float32) / N_NODES
    weight = kaiming_uniform(k_w, (D_IN, D_OUT))

    out = graph_conv_sparse_forward(x, adj, weight)
    out = jax.block_until_ready(out)

    # Reference check against plain f32 JAX. bf16 MXU inputs + one bf16
    # intermediate quantization -> relaxed tolerance.
    z_ref = adj @ (x @ weight)
    ref = jnp.where(z_ref > 0, z_ref, 0.01 * z_ref)
    assert out.shape == (N_NODES, D_OUT)
    rel_err = jnp.max(jnp.abs(out - ref)) / (jnp.max(jnp.abs(ref)) + 1e-6)
    assert rel_err < 2e-2, f"mismatch vs reference: rel err {rel_err}"

    print("KERNEL_OK")
</pallas_src>

<mosaic_0001>
module attributes {stable_mosaic.version = 11 : i64} {
  func.func @_mm_kernel_single_k(%arg0: i32, %arg1: i32, %arg2: memref<64x128xf32, #tpu.memory_space<vmem>>, %arg3: memref<128x128xbf16, #tpu.memory_space<vmem>>, %arg4: memref<64x128xbf16, #tpu.memory_space<vmem>>) attributes {dimension_semantics = [#tpu.dimension_semantics<parallel>, #tpu.dimension_semantics<parallel>], iteration_bounds = array<i64: 2, 1>, scalar_prefetch = 0 : i64, scratch_operands = 0 : i64, tpu.core_type = #tpu.core_type<tc>, window_params = [{transform_indices = @transform_0, window_bounds = array<i64: 64, 128>}, {transform_indices = @transform_1, window_bounds = array<i64: 128, 128>}, {transform_indices = @transform_2, window_bounds = array<i64: 64, 128>}]} {
    %c0 = arith.constant 0 : index
    %c0_0 = arith.constant 0 : index
    %0 = vector.load %arg2[%c0, %c0_0] : memref<64x128xf32, #tpu.memory_space<vmem>>, vector<64x128xf32>
    %1 = arith.truncf %0 : vector<64x128xf32> to vector<64x128xbf16>
    %c0_1 = arith.constant 0 : index
    %c0_2 = arith.constant 0 : index
    %2 = vector.load %arg3[%c0_1, %c0_2] : memref<128x128xbf16, #tpu.memory_space<vmem>>, vector<128x128xbf16>
    %cst = arith.constant dense<0.000000e+00> : vector<64x128xf32>
    %3 = tpu.matmul %1, %2, %cst {dimension_numbers = #tpu.dot_dimension_numbers<[1], [0], [0], [1], [0, 0, 1, 1], [], []>} : vector<64x128xbf16>, vector<128x128xbf16>, vector<64x128xf32> -> vector<64x128xf32>
    %4 = arith.truncf %3 : vector<64x128xf32> to vector<64x128xbf16>
    %c0_3 = arith.constant 0 : index
    %c0_4 = arith.constant 0 : index
    %5 = vector.load %arg4[%c0_3, %c0_4] : memref<64x128xbf16, #tpu.memory_space<vmem>>, vector<64x128xbf16>
    tpu.vector_store %arg4[%c0_3, %c0_4], %4 {strides = array<i32>} : memref<64x128xbf16, #tpu.memory_space<vmem>>, vector<64x128xbf16>,
    return
  }
  func.func @transform_0(%arg0: i32, %arg1: i32) -> (i32, i32) {
    %c0_i32 = arith.constant 0 : i32
    %c0_i32_0 = arith.constant 0 : i32
    return %arg0, %c0_i32 : i32, i32
  }
  func.func @transform_1(%arg0: i32, %arg1: i32) -> (i32, i32) {
    %c0_i32 = arith.constant 0 : i32
    %c0_i32_0 = arith.constant 0 : i32
    return %c0_i32, %arg1 : i32, i32
  }
  func.func @transform_2(%arg0: i32, %arg1: i32) -> (i32, i32) {
    %c0_i32 = arith.constant 0 : i32
    return %arg0, %arg1 : i32, i32
  }
}

</mosaic_0001>

<llo_original>
// kernel: tpu_custom_call.1
$region0: #{tpu_custom_call.1}
  #allocation0 [shape = 'u32[]', space=smem, size = 0x4, offset = 0x4, fixed_abs, tag = 'smem constant byte address 0x4 - core index']
  #allocation1 [shape = 'u32[144,128]{1,0:T(1,128)}', space=vmem, size = 0x12000, scoped, tag = 'internal scratch']
  %s0 = inlined_call_operand.hbm [shape: f32[128,128], index: 0, kind: input, shape index: {}]
  %s1 = inlined_call_operand.hbm [shape: bf16[128,128], index: 1, kind: input, shape index: {}]
  %s2 = inlined_call_operand.hbm [shape: bf16[128,128], index: 2, kind: output, shape index: {}]
  %s3 = sld [smem:[#allocation0]]
  $region49: #{tpu_custom_call.1} parent=0
    _
  %s5 = ssub.s32 1, %s3
  %s6 = scalar_select 0, %s5, %s3
  $region1: #{tpu_custom_call.1} parent=0
    #allocation2 [shape = 'u8[65536]{0}', space=vmem, size = 0x10000, scoped, tag = 'input window, operand 0']
    #allocation3 [shape = 's32[2]{0}', space=sflag, size = 0x8, scoped, tag = 'scoped memory for tpu_custom_call.1']
    #allocation4 [shape = 's32[2]{0}', space=sflag, size = 0x8, scoped, tag = 'scoped memory for tpu_custom_call.1']
    #allocation5 [shape = 'u8[32768]{0}', space=vmem, size = 0x8000, scoped, tag = 'input window, operand 1, single buffered']
    #allocation6 [shape = 's32[1]{0}', space=sflag, size = 0x4, scoped, tag = 'scoped memory for tpu_custom_call.1']
    #allocation7 [shape = 'u8[32768]{0}', space=vmem, size = 0x8000, scoped, tag = 'output window, operand 0']
    %7 = vsyncpa [#allocation3], 0
    %s8 = scalar_lea.sflag [#allocation3], 1
    %9 = vsyncpa %s8, 0
    %10 = vsyncpa [#allocation6], 0
    %11 = vsyncpa [#allocation4], 0
    %s12 = scalar_lea.sflag [#allocation4], 1
    %13 = vsyncpa %s12, 0
    loop: start=0, step=1, limit=4
    $region2: #{tpu_custom_call.1} parent=1 // loop_pre_header
      _
    $region3: #{tpu_custom_call.1} parent=1 // loop_header
      %s15 = sphi 0, %s19
      %p16 = scmp.ge.s32.totalorder %s15, 4
      %s22 = sphi 0, %s34
      %s23 = sphi 0, %s30
      %s24 = sphi 0, %s22
      %s25 = sphi 0, %s23
      %s26 = sphi 0, %s24
      %s27 = sphi 0, %s25
      %s37 = sphi 0, %s39
      %s40 = sphi 0, %s37
      %s41 = sphi 0, %s40
      %s57 = sphi 0, %s41
      %s63 = sphi 0, %s65
      %s66 = sphi 0, %s63
      %s67 = sphi 0, %s66
      %s83 = sphi 0, %s67
      %s91 = sphi 0, %s93
      %s94 = sphi 0, %s91
      %s95 = sphi 0, %s94
      %s111 = sphi 0, %s95
    $region4: #{tpu_custom_call.1} parent=1 // loop_header_branch
      %18 = sbr.rel (%p16) target = $region8
    $region5: #{tpu_custom_call.1} parent=1 // loop_body
      %s20 = ssub.s32 %s15, 1
      %s21 = ssub.s32 %s15, 2
      %s28 = sadd.s32 1, %s23
      %p29 = scmp.ge.s32.totalorder %s28, 1
      %s30 = scalar_select %p29, 0, %s28
      %s31 = sadd.s32 1, %s22
      %s32 = scalar_select %p29, %s31, %s22
      %p33 = scmp.ge.s32.totalorder %s32, 2
      %s34 = scalar_select %p33, 0, %s32
      %s35 = ssub.s32 %s22, %s34
      %p36 = scmp.eq.s32.totalorder %s35, 0
      %s38 = sadd.s32 %s37, 1
      %s39 = scalar_select %p36, %s37, %s38
      %p42 = pneg %p36
      %p43 = scmp.eq.s32.totalorder %s15, 1
      %p44 = por %p42, %p43
      %p45 = scmp.ne.s32.totalorder %s37, %s40
      %p46 = scmp.eq.s32.totalorder %s15, 0
      %p47 = por %p45, %p46
      %p48 = scmp.ne.s32.totalorder %s37, %s40
      %p49 = scmp.eq.s32.totalorder %s20, 1
      %p50 = por %p48, %p49
      %p51 = scmp.ne.s32.totalorder %s40, %s41
      %p52 = scmp.eq.s32.totalorder %s20, 0
      %p53 = por %p51, %p52
      %p54 = scmp.ne.s32.totalorder %s40, %s41
      %p55 = scmp.eq.s32.totalorder %s21, 1
      %p56 = por %p54, %p55
      %p58 = scmp.ne.s32.totalorder %s41, %s57
      %p59 = scmp.eq.s32.totalorder %s21, 0
      %p60 = por %p58, %p59
      %s61 = ssub.s32 %s23, %s30
      %p62 = scmp.eq.s32.totalorder %s61, 0
      %s64 = sadd.s32 %s63, 1
      %s65 = scalar_select %p62, %s63, %s64
      %p68 = pneg %p62
      %p69 = scmp.eq.s32.totalorder %s15, 1
      %p70 = por %p68, %p69
      %p71 = scmp.ne.s32.totalorder %s63, %s66
      %p72 = scmp.eq.s32.totalorder %s15, 0
      %p73 = por %p71, %p72
      %p74 = scmp.ne.s32.totalorder %s63, %s66
      %p75 = scmp.eq.s32.totalorder %s20, 1
      %p76 = por %p74, %p75
      %p77 = scmp.ne.s32.totalorder %s66, %s67
      %p78 = scmp.eq.s32.totalorder %s20, 0
      %p79 = por %p77, %p78
      %p80 = scmp.ne.s32.totalorder %s66, %s67
      %p81 = scmp.eq.s32.totalorder %s21, 1
      %p82 = por %p80, %p81
      %p84 = scmp.ne.s32.totalorder %s67, %s83
      %p85 = scmp.eq.s32.totalorder %s21, 0
      %p86 = por %p84, %p85
      %s87 = ssub.s32 %s22, %s34
      %s88 = ssub.s32 %s23, %s30
      %s89 = sor.u32 %s87, %s88
      %p90 = scmp.eq.s32.totalorder %s89, 0
      %s92 = sadd.s32 %s91, 1
      %s93 = scalar_select %p90, %s91, %s92
      %p96 = pneg %p90
      %p97 = scmp.eq.s32.totalorder %s15, 1
      %p98 = por %p96, %p97
      %p99 = scmp.ne.s32.totalorder %s91, %s94
      %p100 = scmp.eq.s32.totalorder %s15, 0
      %p101 = por %p99, %p100
      %p102 = scmp.ne.s32.totalorder %s91, %s94
      %p103 = scmp.eq.s32.totalorder %s20, 1
      %p104 = por %p102, %p103
      %p105 = scmp.ne.s32.totalorder %s94, %s95
      %p106 = scmp.eq.s32.totalorder %s20, 0
      %p107 = por %p105, %p106
      %p108 = scmp.ne.s32.totalorder %s94, %s95
      %p109 = scmp.eq.s32.totalorder %s21, 1
      %p110 = por %p108, %p109
      %p112 = scmp.ne.s32.totalorder %s95, %s111
      %p113 = scmp.eq.s32.totalorder %s21, 0
      %p114 = por %p112, %p113
      %p115 = scmp.le.s32.totalorder 1, %s15
      %p116 = scmp.lt.s32.totalorder %s15, 3
      %p117 = pnand %p115, %p116
      %p118 = pneg %p117
      // Predicated region
      $region9: #{tpu_custom_call.1} parent=5 // pred_check
        _
      $region10: #{tpu_custom_call.1} parent=5 // pred_check_branch
        %120 = sbr.rel (%p117) target = $region12
      $region11: #{tpu_custom_call.1} parent=5 // pred_region
        %s121 = ssub.s32 %s15, 1
        // Predicated region
        $region13: #{tpu_custom_call.1} parent=11 // pred_check
          %p122 = pneg %p79
        $region14: #{tpu_custom_call.1} parent=11 // pred_check_branch
          %124 = sbr.rel (%p122) target = $region16
        $region15: #{tpu_custom_call.1} parent=11 // pred_region
          %s126 = ssub.s32 1024, 1024
          %127 = vsyncadd [#allocation6], %s126
          %s128 = smul.addr %s25, 64
          %s129 = scalar_lea.hbm %s1, %s128
          %s130 = sshll.u32 [#allocation5], 4
          %s131 = int_to_ptr.vmem [resolvable:$true] %s130
          %136 = dma.hbm_to_vmem [thread:$0]  %s129, 1024, %s131, [#allocation6], 64, 64, 4
        $region16: #{tpu_custom_call.1} parent=11 // pred_fallthru
          _
      $region12: #{tpu_custom_call.1} parent=5 // pred_fallthru
        _
      %p137 = scmp.lt.s32.totalorder %s15, 2
      // Predicated region
      $region17: #{tpu_custom_call.1} parent=5 // pred_check
        %p138 = pneg %p137
      $region18: #{tpu_custom_call.1} parent=5 // pred_check_branch
        %140 = sbr.rel (%p138) target = $region20
      $region19: #{tpu_custom_call.1} parent=5 // pred_region
        // Predicated region
        $region21: #{tpu_custom_call.1} parent=19 // pred_check
          %p141 = pneg %p47
        $region22: #{tpu_custom_call.1} parent=19 // pred_check_branch
          %143 = sbr.rel (%p141) target = $region24
        $region23: #{tpu_custom_call.1} parent=19 // pred_region
          %s144 = sand.u32 %s37, 1
          %s145 = scalar_lea.sflag [#allocation3], %s144
          %s146 = sand.u32 %s37, 1
          %s147 = smul.addr %s146, 64
          %s148 = scalar_lea.vmem [#allocation2], %s147
          %s149 = smul.u32 8, %s22
          %s151 = ssub.s32 1024, 1024
          %152 = vsyncadd %s145, %s151
          %s153 = smul.addr %s149, 128
          %s154 = scalar_lea.hbm %s0, %s153
          %s155 = sshll.u32 %s148, 4
          %s156 = int_to_ptr.vmem [resolvable:$true] %s155
          %161 = dma.hbm_to_vmem [thread:$0]  %s154, 1024, %s156, %s145, 128, 128, 8
        $region24: #{tpu_custom_call.1} parent=19 // pred_fallthru
          _
      $region20: #{tpu_custom_call.1} parent=5 // pred_fallthru
        _
      %p162 = scmp.le.s32.totalorder 1, %s15
      %p163 = scmp.lt.s32.totalorder %s15, 3
      %p164 = pnand %p162, %p163
      %p165 = pneg %p164
      // Predicated region
      $region25: #{tpu_custom_call.1} parent=5 // pred_check
        _
      $region26: #{tpu_custom_call.1} parent=5 // pred_check_branch
        %167 = sbr.rel (%p164) target = $region28
      $region27: #{tpu_custom_call.1} parent=5 // pred_region
        %s168 = ssub.s32 %s15, 1
        %s169 = sand.u32 %s40, 1
        %s170 = scalar_lea.sflag [#allocation3], %s169
        %s171 = sand.u32 %s40, 1
        %s172 = smul.addr %s171, 64
        %s173 = scalar_lea.vmem [#allocation2], %s172
        // Predicated region
        $region29: #{tpu_custom_call.1} parent=27 // pred_check
          %p174 = pneg %p53
        $region30: #{tpu_custom_call.1} parent=27 // pred_check_branch
          %176 = sbr.rel (%p174) target = $region32
        $region31: #{tpu_custom_call.1} parent=27 // pred_region
          %177 = dma.done %s170, 1024
        $region32: #{tpu_custom_call.1} parent=27 // pred_fallthru
          _
        // Predicated region
        $region33: #{tpu_custom_call.1} parent=27 // pred_check
          %p178 = pneg %p79
        $region34: #{tpu_custom_call.1} parent=27 // pred_check_branch
          %180 = sbr.rel (%p178) target = $region36
        $region35: #{tpu_custom_call.1} parent=27 // pred_region
          %181 = dma.done [#allocation6], 1024
        $region36: #{tpu_custom_call.1} parent=27 // pred_fallthru
          _
        %s182 = sand.u32 %s40, 1
        %s183 = scalar_lea.sflag [#allocation3], %s182
        %s184 = sand.u32 %s40, 1
        %s185 = smul.addr %s184, 64
        %s186 = scalar_lea.vmem [#allocation2], %s185
        %p187 = pneg %p53
        %p188 = pneg %p50
        %p189 = pneg %p79
        %p190 = pneg %p76
        %p191 = pneg %p107
        %p192 = pneg %p104
        %s193 = sand.u32 %s94, 1
        %s194 = scalar_lea.sflag [#allocation4], %s193
        %s195 = sand.u32 %s94, 1
        %s196 = smul.addr %s195, 32
        %s197 = scalar_lea.vmem [#allocation7], %s196
        %s198 = smul.u32 8, %s24
        %s199 = smul.u32 8, %s24
        %v201 = vld [vmem:[%s173] sm:$0xff]
        %v202 = vld [vmem:[%s173 + $0x8] sm:$0xff]
        %v203 = vld [vmem:[%s173 + $0x10] sm:$0xff]
        %v204 = vld [vmem:[%s173 + $0x18] sm:$0xff]
        %v205 = vld [vmem:[%s173 + $0x20] sm:$0xff]
        %v206 = vld [vmem:[%s173 + $0x28] sm:$0xff]
        %v207 = vld [vmem:[%s173 + $0x30] sm:$0xff]
        %v208 = vld [vmem:[%s173 + $0x38] sm:$0xff]
        %v209 = vpack.c.bf16 %v202, %v201
        %v210 = vpack.c.bf16 %v204, %v203
        %v211 = vpack.c.bf16 %v206, %v205
        %v212 = vpack.c.bf16 %v208, %v207
        %v213 = vld [vmem:[#allocation5] sm:$0xf]
        %v214 = vld [vmem:[#allocation5 + $0x4] sm:$0xf]
        %v215 = vld [vmem:[#allocation5 + $0x8] sm:$0xf]
        %v216 = vld [vmem:[#allocation5 + $0xc] sm:$0xf]
        %v217 = vld [vmem:[#allocation5 + $0x10] sm:$0xf]
        %v218 = vld [vmem:[#allocation5 + $0x14] sm:$0xf]
        %v219 = vld [vmem:[#allocation5 + $0x18] sm:$0xf]
        %v220 = vld [vmem:[#allocation5 + $0x1c] sm:$0xf]
        %v221 = vld [vmem:[#allocation5 + $0x20] sm:$0xf]
        %v222 = vld [vmem:[#allocation5 + $0x24] sm:$0xf]
        %v223 = vld [vmem:[#allocation5 + $0x28] sm:$0xf]
        %v224 = vld [vmem:[#allocation5 + $0x2c] sm:$0xf]
        %v225 = vld [vmem:[#allocation5 + $0x30] sm:$0xf]
        %v226 = vld [vmem:[#allocation5 + $0x34] sm:$0xf]
        %v227 = vld [vmem:[#allocation5 + $0x38] sm:$0xf]
        %v228 = vld [vmem:[#allocation5 + $0x3c] sm:$0xf]
        %v245 = vunpack.c.l.b16 %v213
        %v246 = vunpack.c.l.b16 %v214
        %v247 = vunpack.c.l.b16 %v215
        %v248 = vunpack.c.l.b16 %v216
        %v249 = vunpack.c.l.b16 %v217
        %v250 = vunpack.c.l.b16 %v218
        %v251 = vunpack.c.l.b16 %v219
        %v252 = vunpack.c.l.b16 %v220
        %v253 = vunpack.c.l.b16 %v221
        %v254 = vunpack.c.l.b16 %v222
        %v255 = vunpack.c.l.b16 %v223
        %v256 = vunpack.c.l.b16 %v224
        %v257 = vunpack.c.l.b16 %v225
        %v258 = vunpack.c.l.b16 %v226
        %v259 = vunpack.c.l.b16 %v227
        %v260 = vunpack.c.l.b16 %v228
        %v261 = vpack.c.b16 %v246, %v245
        %v262 = vpack.c.b16 %v248, %v247
        %v263 = vpack.c.b16 %v250, %v249
        %v264 = vpack.c.b16 %v252, %v251
        %v265 = vpack.c.b16 %v254, %v253
        %v266 = vpack.c.b16 %v256, %v255
        %v267 = vpack.c.b16 %v258, %v257
        %v268 = vpack.c.b16 %v260, %v259
        %277 = vmatprep.subr.bf16.mxu0 0
        %278 = vmatpush1.bf16.msra.mxu0 %v261
        %279 = vmatprep.subr.bf16.mxu0 0
        %280 = vmatpush1.bf16.msra.mxu0 %v262
        %281 = vmatprep.subr.bf16.mxu0 0
        %282 = vmatpush1.bf16.msra.mxu0 %v263
        %283 = vmatprep.subr.bf16.mxu0 0
        %284 = vmatpush1.bf16.msra.mxu0 %v264
        %285 = vmatprep.subr.bf16.mxu0 0
        %286 = vmatpush1.bf16.msra.mxu0 %v265
        %287 = vmatprep.subr.bf16.mxu0 0
        %288 = vmatpush1.bf16.msra.mxu0 %v266
        %289 = vmatprep.subr.bf16.mxu0 0
        %290 = vmatpush1.bf16.msra.mxu0 %v267
        %291 = vmatprep.subr.bf16.mxu0 0
        %292 = vmatpush1.bf16.msra.mxu0 %v268
        %293 = vmatprep.subr.bf16.mxu0 0
        %294 = vmatpush1.bf16.msra.mxu0 0
        %295 = vmatprep.subr.bf16.mxu0 0
        %296 = vmatpush1.bf16.msra.mxu0 0
        %297 = vmatprep.subr.bf16.mxu0 0
        %298 = vmatpush1.bf16.msra.mxu0 0
        %299 = vmatprep.subr.bf16.mxu0 0
        %300 = vmatpush1.bf16.msra.mxu0 0
        %301 = vmatprep.subr.bf16.mxu0 0
        %302 = vmatpush1.bf16.msra.mxu0 0
        %303 = vmatprep.subr.bf16.mxu0 0
        %304 = vmatpush1.bf16.msra.mxu0 0
        %305 = vmatprep.subr.bf16.mxu0 0
        %306 = vmatpush1.bf16.msra.mxu0 0
        %307 = vmatprep.subr.bf16.mxu0 0
        %308 = vmatpush1.bf16.msra.mxu0 0
        %309 = vmatprep.mubr.bf16.mxu0 0
        %310 = vmatmul.mubr.bf16.gmra.mrb[0].mxu0 %v209
        %v311 = vpop.f32.mrb[0].mxu0
        %v312 = vadd.f32 0.0, %v311
        %v313 = vpop.f32.mrb[0].mxu0
        %v314 = vpop.f32.mrb[0].mxu0
        %v315 = vadd.f32 0.0, %v314
        %v316 = vpop.f32.mrb[0].mxu0
        %317 = vmatprep.mubr.bf16.mxu0 0
        %318 = vmatmul.mubr.bf16.gmra.mrb[0].mxu0 %v210
        %v319 = vpop.f32.mrb[0].mxu0
        %v320 = vadd.f32 0.0, %v319
        %v321 = vpop.f32.mrb[0].mxu0
        %v322 = vpop.f32.mrb[0].mxu0
        %v323 = vadd.f32 0.0, %v322
        %v324 = vpop.f32.mrb[0].mxu0
        %325 = vmatprep.mubr.bf16.mxu0 0
        %326 = vmatmul.mubr.bf16.gmra.mrb[0].mxu0 %v211
        %v327 = vpop.f32.mrb[0].mxu0
        %v328 = vadd.f32 0.0, %v327
        %v329 = vpop.f32.mrb[0].mxu0
        %v330 = vpop.f32.mrb[0].mxu0
        %v331 = vadd.f32 0.0, %v330
        %v332 = vpop.f32.mrb[0].mxu0
        %333 = vmatprep.mubr.bf16.mxu0 0
        %334 = vmatmul.mubr.bf16.gmra.mrb[0].mxu0 %v212
        %v335 = vpop.f32.mrb[0].mxu0
        %v336 = vadd.f32 0.0, %v335
        %v337 = vpop.f32.mrb[0].mxu0
        %v338 = vpop.f32.mrb[0].mxu0
        %v339 = vadd.f32 0.0, %v338
        %v340 = vpop.f32.mrb[0].mxu0
        %341 = vdwg.mxu0
        %v342 = vpack.c.bf16 %v315, %v312
        %v343 = vpack.c.bf16 %v323, %v320
        %v344 = vpack.c.bf16 %v331, %v328
        %v345 = vpack.c.bf16 %v339, %v336
        %v350 = vunpack.c.l.b16 %v342
        %v351 = vunpack.c.h.b16 %v342
        %v352 = vunpack.c.l.b16 %v343
        %v353 = vunpack.c.h.b16 %v343
        %v354 = vunpack.c.l.b16 %v344
        %v355 = vunpack.c.h.b16 %v344
        %v356 = vunpack.c.l.b16 %v345
        %v357 = vunpack.c.h.b16 %v345
        %v358 = vpack.c.b16 %v350, %v350
        %v359 = vpack.c.b16 %v351, %v351
        %v360 = vpack.c.b16 %v352, %v352
        %v361 = vpack.c.b16 %v353, %v353
        %v362 = vpack.c.b16 %v354, %v354
        %v363 = vpack.c.b16 %v355, %v355
        %v364 = vpack.c.b16 %v356, %v356
        %v365 = vpack.c.b16 %v357, %v357
        %374 = vst [vmem:[%s197] sm:$0xf] %v358
        %375 = vst [vmem:[%s197 + $0x4] sm:$0xf] %v359
        %376 = vst [vmem:[%s197 + $0x8] sm:$0xf] %v360
        %377 = vst [vmem:[%s197 + $0xc] sm:$0xf] %v361
        %378 = vst [vmem:[%s197 + $0x10] sm:$0xf] %v362
        %379 = vst [vmem:[%s197 + $0x14] sm:$0xf] %v363
        %380 = vst [vmem:[%s197 + $0x18] sm:$0xf] %v364
        %381 = vst [vmem:[%s197 + $0x1c] sm:$0xf] %v365
        %s382 = sand.u32 %s94, 1
        %s383 = scalar_lea.sflag [#allocation4], %s382
        %s384 = sand.u32 %s94, 1
        %s385 = smul.addr %s384, 32
        %s386 = scalar_lea.vmem [#allocation7], %s385
        // Predicated region
        $region37: #{tpu_custom_call.1} parent=27 // pred_check
          %p387 = pneg %p104
        $region38: #{tpu_custom_call.1} parent=27 // pred_check_branch
          %389 = sbr.rel (%p387) target = $region40
        $region39: #{tpu_custom_call.1} parent=27 // pred_region
          %s390 = smul.u32 8, %s24
          %s392 = ssub.s32 512, 512
          %393 = vsyncadd %s383, %s392
          %s394 = sadd.s32 %s25, %s390
          %s395 = smul.addr %s394, 64
          %s396 = scalar_lea.hbm %s2, %s395
          %s397 = sshll.u32 %s386, 4
          %s398 = int_to_ptr.vmem [resolvable:$true] %s397
          %403 = dma.vmem_to_hbm [thread:$0]  %s398, 512, %s396, %s383, 64, 64, 4
        $region40: #{tpu_custom_call.1} parent=27 // pred_fallthru
          _
      $region28: #{tpu_custom_call.1} parent=5 // pred_fallthru
        _
      %p404 = scmp.le.s32.totalorder 2, %s15
      // Predicated region
      $region41: #{tpu_custom_call.1} parent=5 // pred_check
        %p405 = pneg %p404
      $region42: #{tpu_custom_call.1} parent=5 // pred_check_branch
        %407 = sbr.rel (%p405) target = $region44
      $region43: #{tpu_custom_call.1} parent=5 // pred_region
        %s408 = ssub.s32 %s15, 2
        // Predicated region
        $region45: #{tpu_custom_call.1} parent=43 // pred_check
          %p409 = pneg %p110
        $region46: #{tpu_custom_call.1} parent=43 // pred_check_branch
          %411 = sbr.rel (%p409) target = $region48
        $region47: #{tpu_custom_call.1} parent=43 // pred_region
          %s412 = sand.u32 %s95, 1
          %s413 = scalar_lea.sflag [#allocation4], %s412
          %s414 = sand.u32 %s95, 1
          %s415 = smul.addr %s414, 32
          %s416 = scalar_lea.vmem [#allocation7], %s415
          %417 = dma.done %s413, 512
        $region48: #{tpu_custom_call.1} parent=43 // pred_fallthru
          _
      $region44: #{tpu_custom_call.1} parent=5 // pred_fallthru
        _
    $region6: #{tpu_custom_call.1} parent=1 // loop_footer
      %s19 = sadd.s32 1, %s15
    $region7: #{tpu_custom_call.1} parent=1 // loop_footer_branch
      %14 = sbr.rel target = $region3
    $region8: #{tpu_custom_call.1} parent=1 // loop_exit
      _
    %418 = vsyncpa [#allocation3], 1
    %s419 = scalar_lea.sflag [#allocation3], 1
    %420 = vsyncpa %s419, 1
    %421 = vsyncpa [#allocation6], 1
    %422 = vsyncpa [#allocation4], 1
    %s423 = scalar_lea.sflag [#allocation4], 1
    %424 = vsyncpa %s423, 1

</llo_original>
